<compile_context>
chip_gen: v5e
topology: v5e:2x2
jax: 0.10.0
libtpu: 0.0.40
codegen_flags: <defaults>
</compile_context>

<pallas_src>
import functools

import jax
import jax.numpy as jnp
from jax.experimental import pallas as pl
from jax.experimental.pallas import tpu as pltpu


def _round_up(n: int, m: int) -> int:
    return ((n + m - 1) // m) * m


def _vmem_capacity_bytes() -> int:
    """Physical VMEM of the local TPU; conservative 64 MiB if unqueryable."""
    try:
        return int(pltpu.get_tpu_info().vmem_capacity_bytes)
    except Exception:  # pragma: no cover - older JAX / non-TPU tracing
        return 64 * 1024 * 1024


def residual_gate_kernel(x_ref, w_ref, b_ref, o_ref, *, h_pad: int):
    """One [tile_m, H_pad] row tile of: sigmoid(x@W1^T+b1) * x + (x@W2^T+b2).

    w_ref: fused resident [H_pad, 2*H_pad] weight (W1^T | W2^T), f32 or bf16.
    b_ref: fused resident [1, 2*H_pad] bias (f32).
    """
    x = x_ref[...]                                    # [tile_m, H_pad], input dtype
    xm = x.astype(w_ref.dtype)                        # matmul dtype (f32 or bf16)

    # Single fused MXU pass, f32 accumulation; bias broadcasts as a (1, 2H) row.
    h = jnp.dot(xm, w_ref[...], preferred_element_type=jnp.float32) + b_ref[...]

    h1 = h[:, :h_pad]                                 # gate branch (lane-aligned slice)
    h2 = h[:, h_pad:]                                 # residual branch

    # f32 epilogue with the ORIGINAL-precision x (EUP sigmoid + VPU mul/add).
    y = jax.nn.sigmoid(h1) * x.astype(jnp.float32) + h2
    o_ref[...] = y.astype(o_ref.dtype)


def pack_residual_gate_params(w1, b1, w2, b2, *, matmul_dtype=None):
    """Pack + pad the two Linears into one fused weight/bias.

    Call ONCE at parameter-load time (not per forward) — rebuilding these every
    step moves ~3 * H_pad * 2*H_pad * itemsize bytes through HBM for nothing.

    w1, w2: (H, H) in PyTorch (out, in) layout.  b1, b2: (H,).
    matmul_dtype: None -> f32 weights; jnp.bfloat16 recommended on v5e/v6e/v7x
    for the compute-bound regime (f32 accumulation is kept in the kernel).
    """
    H = w1.shape[0]
    H_pad = _round_up(max(H, 128), 128)
    w_dtype = jnp.dtype(matmul_dtype) if matmul_dtype is not None else jnp.dtype(jnp.float32)

    w_cat = jnp.zeros((H_pad, 2 * H_pad), w_dtype)
    w_cat = w_cat.at[:H, :H].set(jnp.transpose(w1).astype(w_dtype))
    w_cat = w_cat.at[:H, H_pad:H_pad + H].set(jnp.transpose(w2).astype(w_dtype))

    b_cat = jnp.zeros((1, 2 * H_pad), jnp.float32)
    b_cat = b_cat.at[0, :H].set(b1.astype(jnp.float32))
    b_cat = b_cat.at[0, H_pad:H_pad + H].set(b2.astype(jnp.float32))
    return w_cat, b_cat


def residual_gate_packed(x, w_cat, b_cat, *, hidden_dim=None, tile_m=None):
    """Forward pass with pre-packed params.  x: (..., H).  Returns same shape/dtype."""
    orig_shape = x.shape
    H = orig_shape[-1] if hidden_dim is None else hidden_dim
    two_h_pad = w_cat.shape[1]
    H_pad = two_h_pad // 2

    x2d = x.reshape(-1, H)                            # [M, H]
    M = x2d.shape[0]

    # Lane padding ONLY when H is not already a multiple of 128 (keeps output
    # stores lane-dense without paying a pad/slice round-trip when unnecessary).
    if H != H_pad:
        x_in = jnp.zeros((M, H_pad), x.dtype).at[:, :H].set(x2d)
    else:
        x_in = x2d

    vmem_cap = _vmem_capacity_bytes()
    w_itemsize = jnp.dtype(w_cat.dtype).itemsize
    x_bytes = jnp.dtype(x.dtype).itemsize

    # Generation-aware row tile.
    if tile_m is None:
        if vmem_cap >= 96 * 1024 * 1024:              # v5e / v6e (128 MiB VMEM)
            tile_m = 2048 if H_pad <= 512 else 1024
        else:                                         # v7x (64 MiB VMEM)
            tile_m = 1024 if H_pad <= 512 else 512
    # Guarantee >= 2 grid steps when there are enough rows so the "parallel"
    # axis can shard across v7x's two TensorCores (near-free on v5e/v6e).
    if M > 8:
        tile_m = min(tile_m, max(8, _round_up(pl.cdiv(M, 2), 8)))
    tile_m = max(8, min(tile_m, _round_up(M, 8)))     # multiple of 8 sublanes

    grid = (pl.cdiv(M, tile_m),)                      # ragged last tile handled by Pallas

    def _call(single_buffer_weights: bool):
        n_wbuf = 1 if single_buffer_weights else 2
        # Real footprint: double-buffered x/out tiles, resident weights/bias,
        # f32 matmul result h, f32 y, f32 copy of x, matmul-dtype cast of x.
        vmem_bytes = (
            2 * tile_m * H_pad * x_bytes              # x tiles (double buffered)
            + 2 * tile_m * H_pad * x_bytes            # out tiles (double buffered)
            + n_wbuf * H_pad * two_h_pad * w_itemsize  # resident fused weight
            + n_wbuf * two_h_pad * 4                  # resident fused bias
            + tile_m * two_h_pad * 4                  # f32 h intermediate
            + 2 * tile_m * H_pad * 4                  # f32 y + f32 copy of x
            + tile_m * H_pad * w_itemsize             # x cast to matmul dtype
            + 2 * 1024 * 1024                         # compiler scratch slack
        )
        # Clamp to ~87% of physical VMEM (headroom for compiler internals).
        vmem_limit = int(min(max(vmem_bytes, 32 * 1024 * 1024),
                             int(0.875 * vmem_cap)))

        if single_buffer_weights:
            try:
                w_spec = pl.BlockSpec((H_pad, two_h_pad), lambda i: (0, 0),
                                      pipeline_mode=pl.Buffered(1))
                b_spec = pl.BlockSpec((1, two_h_pad), lambda i: (0, 0),
                                      pipeline_mode=pl.Buffered(1))
            except TypeError:
                w_spec = pl.BlockSpec((H_pad, two_h_pad), lambda i: (0, 0))
                b_spec = pl.BlockSpec((1, two_h_pad), lambda i: (0, 0))
        else:
            w_spec = pl.BlockSpec((H_pad, two_h_pad), lambda i: (0, 0))
            b_spec = pl.BlockSpec((1, two_h_pad), lambda i: (0, 0))

        return pl.pallas_call(
            functools.partial(residual_gate_kernel, h_pad=H_pad),
            out_shape=jax.ShapeDtypeStruct((M, H_pad), x.dtype),
            grid_spec=pltpu.PrefetchScalarGridSpec(
                num_scalar_prefetch=0,
                grid=grid,
                in_specs=[
                    pl.BlockSpec((tile_m, H_pad), lambda i: (i, 0)),  # x row tile
                    w_spec,                                           # fused W (resident)
                    b_spec,                                           # fused bias (resident)
                ],
                out_specs=pl.BlockSpec((tile_m, H_pad), lambda i: (i, 0)),
            ),
            compiler_params=pltpu.CompilerParams(
                dimension_semantics=("parallel",),  # rows independent -> megacore sharding
                vmem_limit_bytes=vmem_limit,
            ),
        )(x_in, w_cat, b_cat)

    try:
        out = _call(True)                             # single-buffered resident weights
    except Exception:
        out = _call(False)                            # fallback: default buffering

    if H != H_pad:
        out = out[:, :H]
    return out.reshape(orig_shape)


def residual_gate(x, w1, b1, w2, b2, *, tile_m=None, matmul_dtype=None):
    """Convenience wrapper (packs per call).  Prefer pack_residual_gate_params
    once at load time + residual_gate_packed per step."""
    w_cat, b_cat = pack_residual_gate_params(w1, b1, w2, b2, matmul_dtype=matmul_dtype)
    return residual_gate_packed(x, w_cat, b_cat, hidden_dim=w1.shape[0], tile_m=tile_m)


if __name__ == "__main__":
    # Small shapes consistent with the module: (batch, seq, hidden)
    batch, seq, hidden = 2, 8, 32

    key = jax.random.PRNGKey(0)
    kx, kw1, kb1, kw2, kb2 = jax.random.split(key, 5)

    x = jax.random.normal(kx, (batch, seq, hidden), dtype=jnp.float32)
    bound = 1.0 / (hidden ** 0.5)
    w1 = jax.random.uniform(kw1, (hidden, hidden), jnp.float32, -bound, bound)
    b1 = jax.random.uniform(kb1, (hidden,), jnp.float32, -bound, bound)
    w2 = jax.random.uniform(kw2, (hidden, hidden), jnp.float32, -bound, bound)
    b2 = jax.random.uniform(kb2, (hidden,), jnp.float32, -bound, bound)

    # Reference (same math as the PyTorch forward).
    lin1 = x @ w1.T + b1
    lin2 = x @ w2.T + b2
    y_ref = jax.nn.sigmoid(lin1) * x + lin2

    # Pack ONCE (parameter-load time), then run the per-step forward.
    w_cat, b_cat = pack_residual_gate_params(w1, b1, w2, b2)
    y = residual_gate_packed(x, w_cat, b_cat, hidden_dim=hidden)
    y = jax.block_until_ready(y)
    assert y.shape == x.shape
    assert jnp.allclose(y, y_ref, atol=1e-5, rtol=1e-5), float(jnp.max(jnp.abs(y - y_ref)))

    # bf16-matmul path (recommended on v5e/v6e/v7x for large H): bf16 MXU
    # inputs, f32 accumulation, f32 epilogue with original-precision x.
    w_cat_bf16, b_cat_bf16 = pack_residual_gate_params(
        w1, b1, w2, b2, matmul_dtype=jnp.bfloat16)
    y_bf16 = residual_gate_packed(x, w_cat_bf16, b_cat_bf16, hidden_dim=hidden)
    y_bf16 = jax.block_until_ready(y_bf16)
    assert y_bf16.shape == x.shape
    assert jnp.allclose(y_bf16, y_ref, atol=5e-2, rtol=5e-2)

    print("KERNEL_OK")
</pallas_src>

<mosaic_0001>
module attributes {stable_mosaic.version = 11 : i64} {
  func.func @residual_gate_kernel(%arg0: i32, %arg1: memref<8x128xf32, #tpu.memory_space<vmem>>, %arg2: memref<128x256xf32, #tpu.memory_space<vmem>>, %arg3: memref<1x256xf32, #tpu.memory_space<vmem>>, %arg4: memref<8x128xf32, #tpu.memory_space<vmem>>) attributes {dimension_semantics = [#tpu.dimension_semantics<parallel>], iteration_bounds = array<i64: 2>, scalar_prefetch = 0 : i64, scratch_operands = 0 : i64, tpu.core_type = #tpu.core_type<tc>, window_params = [{transform_indices = @transform_0, window_bounds = array<i64: 8, 128>}, {pipeline_mode = #tpu.pipeline_mode<synchronous>, transform_indices = @transform_1, window_bounds = array<i64: 128, 256>}, {pipeline_mode = #tpu.pipeline_mode<synchronous>, transform_indices = @transform_2, window_bounds = array<i64: 1, 256>}, {transform_indices = @transform_3, window_bounds = array<i64: 8, 128>}]} {
    %c0 = arith.constant 0 : index
    %c0_0 = arith.constant 0 : index
    %0 = vector.load %arg1[%c0, %c0_0] : memref<8x128xf32, #tpu.memory_space<vmem>>, vector<8x128xf32>
    %c0_1 = arith.constant 0 : index
    %c0_2 = arith.constant 0 : index
    %1 = vector.load %arg2[%c0_1, %c0_2] : memref<128x256xf32, #tpu.memory_space<vmem>>, vector<128x256xf32>
    %cst = arith.constant dense<0.000000e+00> : vector<8x256xf32>
    %2 = tpu.matmul %0, %1, %cst {dimension_numbers = #tpu.dot_dimension_numbers<[1], [0], [0], [1], [0, 0, 1, 1], [], []>} : vector<8x128xf32>, vector<128x256xf32>, vector<8x256xf32> -> vector<8x256xf32>
    %c0_3 = arith.constant 0 : index
    %c0_4 = arith.constant 0 : index
    %3 = vector.load %arg3[%c0_3, %c0_4] : memref<1x256xf32, #tpu.memory_space<vmem>>, vector<1x256xf32>
    %4 = vector.broadcast %3 : vector<1x256xf32> to vector<8x256xf32>
    %5 = arith.addf %2, %4 : vector<8x256xf32>
    %6 = vector.extract_strided_slice %5 {offsets = [0, 0], sizes = [8, 128], strides = [1, 1]} : vector<8x256xf32> to vector<8x128xf32>
    %7 = vector.extract_strided_slice %5 {offsets = [0, 128], sizes = [8, 128], strides = [1, 1]} : vector<8x256xf32> to vector<8x128xf32>
    %8 = arith.negf %6 : vector<8x128xf32>
    %9 = math.exp %8 : vector<8x128xf32>
    %cst_5 = arith.constant 1.000000e+00 : f32
    %10 = vector.broadcast %cst_5 : f32 to vector<8x128xf32>
    %11 = arith.addf %10, %9 : vector<8x128xf32>
    %12 = arith.divf %10, %11 : vector<8x128xf32>
    %13 = arith.mulf %12, %0 : vector<8x128xf32>
    %14 = arith.addf %13, %7 : vector<8x128xf32>
    %c0_6 = arith.constant 0 : index
    %c0_7 = arith.constant 0 : index
    %15 = vector.load %arg4[%c0_6, %c0_7] : memref<8x128xf32, #tpu.memory_space<vmem>>, vector<8x128xf32>
    tpu.vector_store %arg4[%c0_6, %c0_7], %14 {strides = array<i32>} : memref<8x128xf32, #tpu.memory_space<vmem>>, vector<8x128xf32>,
    return
  }
  func.func @transform_0(%arg0: i32) -> (i32, i32) {
    %c0_i32 = arith.constant 0 : i32
    %c0_i32_0 = arith.constant 0 : i32
    return %arg0, %c0_i32 : i32, i32
  }
  func.func @transform_1(%arg0: i32) -> (i32, i32) {
    %c0_i32 = arith.constant 0 : i32
    %c0_i32_0 = arith.constant 0 : i32
    %c0_i32_1 = arith.constant 0 : i32
    return %c0_i32, %c0_i32_0 : i32, i32
  }
  func.func @transform_2(%arg0: i32) -> (i32, i32) {
    %c0_i32 = arith.constant 0 : i32
    %c0_i32_0 = arith.constant 0 : i32
    %c0_i32_1 = arith.constant 0 : i32
    return %c0_i32, %c0_i32_0 : i32, i32
  }
  func.func @transform_3(%arg0: i32) -> (i32, i32) {
    %c0_i32 = arith.constant 0 : i32
    %c0_i32_0 = arith.constant 0 : i32
    return %arg0, %c0_i32 : i32, i32
  }
}

module attributes {stable_mosaic.version = 11 : i64} {
  func.func @residual_gate_kernel(%arg0: i32, %arg1: memref<8x128xf32, #tpu.memory_space<vmem>>, %arg2: memref<128x256xf32, #tpu.memory_space<vmem>>, %arg3: memref<1x256xf32, #tpu.memory_space<vmem>>, %arg4: memref<8x128xf32, #tpu.memory_space<vmem>>) attributes {dimension_semantics = [#tpu.dimension_semantics<parallel>], iteration_bounds = array<i64: 2>, scalar_prefetch = 0 : i64, scratch_operands = 0 : i64, tpu.core_type = #tpu.core_type<tc>, window_params = [{transform_indices = @transform_0, window_bounds = array<i64: 8, 128>}, {pipeline_mode = #tpu.pipeline_mode<synchronous>, transform_indices = @transform_1, window_bounds = array<i64: 128, 256>}, {pipeline_mode = #tpu.pipeline_mode<synchronous>, transform_indices = @transform_2, window_bounds = array<i64: 1, 256>}, {transform_indices = @transform_3, window_bounds = array<i64: 8, 128>}]} {
    %c0 = arith.constant 0 : index
    %c0_0 = arith.constant 0 : index
    %0 = vector.load %arg1[%c0, %c0_0] : memref<8x128xf32, #tpu.memory_space<vmem>>, vector<8x128xf32>
    %c0_1 = arith.constant 0 : index
    %c0_2 = arith.constant 0 : index
    %1 = vector.load %arg2[%c0_1, %c0_2] : memref<128x256xf32, #tpu.memory_space<vmem>>, vector<128x256xf32>
    %cst = arith.constant dense<0.000000e+00> : vector<8x256xf32>
    %2 = tpu.matmul %0, %1, %cst {dimension_numbers = #tpu.dot_dimension_numbers<[1], [0], [0], [1], [0, 0, 1, 1], [], []>} : vector<8x128xf32>, vector<128x256xf32>, vector<8x256xf32> -> vector<8x256xf32>
    %c0_3 = arith.constant 0 : index
    %c0_4 = arith.constant 0 : index
    %3 = vector.load %arg3[%c0_3, %c0_4] : memref<1x256xf32, #tpu.memory_space<vmem>>, vector<1x256xf32>
    %4 = vector.broadcast %3 : vector<1x256xf32> to vector<8x256xf32>
    %5 = arith.addf %2, %4 : vector<8x256xf32>
    %6 = vector.extract_strided_slice %5 {offsets = [0, 0], sizes = [8, 128], strides = [1, 1]} : vector<8x256xf32> to vector<8x128xf32>
    %7 = vector.extract_strided_slice %5 {offsets = [0, 128], sizes = [8, 128], strides = [1, 1]} : vector<8x256xf32> to vector<8x128xf32>
    %8 = arith.negf %6 : vector<8x128xf32>
    %9 = math.exp %8 : vector<8x128xf32>
    %cst_5 = arith.constant 1.000000e+00 : f32
    %10 = vector.broadcast %cst_5 : f32 to vector<8x128xf32>
    %11 = arith.addf %10, %9 : vector<8x128xf32>
    %12 = arith.divf %10, %11 : vector<8x128xf32>
    %13 = arith.mulf %12, %0 : vector<8x128xf32>
    %14 = arith.addf %13, %7 : vector<8x128xf32>
    %c0_6 = arith.constant 0 : index
    %c0_7 = arith.constant 0 : index
    %15 = vector.load %arg4[%c0_6, %c0_7] : memref<8x128xf32, #tpu.memory_space<vmem>>, vector<8x128xf32>
    tpu.vector_store %arg4[%c0_6, %c0_7], %14 {strides = array<i32>} : memref<8x128xf32, #tpu.memory_space<vmem>>, vector<8x128xf32>,
    return
  }
  func.func @transform_0(%arg0: i32) -> (i32, i32) {
    %c0_i32 = arith.constant 0 : i32
    %c0_i32_0 = arith.constant 0 : i32
    return %arg0, %c0_i32 : i32, i32
  }
  func.func @transform_1(%arg0: i32) -> (i32, i32) {
    %c0_i32 = arith.constant 0 : i32
    %c0_i32_0 = arith.constant 0 : i32
    %c0_i32_1 = arith.constant 0 : i32
    return %c0_i32, %c0_i32_0 : i32, i32
  }
  func.func @transform_2(%arg0: i32) -> (i32, i32) {
    %c0_i32 = arith.constant 0 : i32
    %c0_i32_0 = arith.constant 0 : i32
    %c0_i32_1 = arith.constant 0 : i32
    return %c0_i32, %c0_i32_0 : i32, i32
  }
  func.func @transform_3(%arg0: i32) -> (i32, i32) {
    %c0_i32 = arith.constant 0 : i32
    %c0_i32_0 = arith.constant 0 : i32
    return %arg0, %c0_i32 : i32, i32
  }
}

</mosaic_0001>

<llo_original>
// kernel: tpu_custom_call.1
$region0: #{tpu_custom_call.1}
  #allocation0 [shape = 'u32[]', space=smem, size = 0x4, offset = 0x4, fixed_abs, tag = 'smem constant byte address 0x4 - core index']
  #allocation1 [shape = 'u32[72,128]{1,0:T(1,128)}', space=vmem, size = 0x9000, scoped, tag = 'internal scratch']
  %s0 = inlined_call_operand.hbm [shape: f32[16,128], index: 0, kind: input, shape index: {}]
  %s1 = inlined_call_operand.hbm [shape: f32[128,256], index: 1, kind: input, shape index: {}]
  %s2 = inlined_call_operand.hbm [shape: f32[1,256], index: 2, kind: input, shape index: {}]
  %s3 = inlined_call_operand.hbm [shape: f32[16,128], index: 3, kind: output, shape index: {}]
  %s4 = sld [smem:[#allocation0]]
  $region57: #{tpu_custom_call.1} parent=0
    _
  %s6 = ssub.s32 1, %s4
  %s7 = scalar_select 0, %s6, %s4
  $region1: #{tpu_custom_call.1} parent=0
    #allocation2 [shape = 'u8[8192]{0}', space=vmem, size = 0x2000, scoped, tag = 'input window, operand 0']
    #allocation3 [shape = 's32[2]{0}', space=sflag, size = 0x8, scoped, tag = 'scoped memory for tpu_custom_call.1']
    #allocation4 [shape = 's32[2]{0}', space=sflag, size = 0x8, scoped, tag = 'scoped memory for tpu_custom_call.1']
    #allocation5 [shape = 'u8[131072]{0}', space=vmem, size = 0x20000, scoped, tag = 'input window, operand 1, single buffered']
    #allocation6 [shape = 's32[1]{0}', space=sflag, size = 0x4, scoped, tag = 'scoped memory for tpu_custom_call.1']
    #allocation7 [shape = 'u8[1024]{0}', space=vmem, size = 0x400, scoped, tag = 'input window, operand 2, single buffered']
    #allocation8 [shape = 'u8[8192]{0}', space=vmem, size = 0x2000, scoped, tag = 'output window, operand 0']
    %8 = vsyncpa [#allocation3], 0
    %s9 = scalar_lea.sflag [#allocation3], 1
    %10 = vsyncpa %s9, 0
    %11 = vsyncpa [#allocation6], 0
    %12 = vsyncpa [#allocation4], 0
    %s13 = scalar_lea.sflag [#allocation4], 1
    %14 = vsyncpa %s13, 0
    loop: start=0, step=1, limit=4
    $region2: #{tpu_custom_call.1} parent=1 // loop_pre_header
      _
    $region3: #{tpu_custom_call.1} parent=1 // loop_header
      %s16 = sphi 0, %s20
      %p17 = scmp.ge.s32.totalorder %s16, 4
      %s26 = sphi 0, %s28
      %s29 = sphi 0, %s26
      %s30 = sphi 0, %s29
      %s46 = sphi 0, %s30
      %s50 = sphi 0, %s50
      %s52 = sphi 0, %s50
      %s53 = sphi 0, %s52
      %s67 = sphi 0, %s53
      %s71 = sphi 0, %s71
      %s73 = sphi 0, %s71
      %s74 = sphi 0, %s73
      %s88 = sphi 0, %s74
      %s94 = sphi 0, %s96
      %s97 = sphi 0, %s94
      %s98 = sphi 0, %s97
      %s114 = sphi 0, %s98
    $region4: #{tpu_custom_call.1} parent=1 // loop_header_branch
      %19 = sbr.rel (%p17) target = $region8
    $region5: #{tpu_custom_call.1} parent=1 // loop_body
      %s21 = ssub.s32 %s16, 1
      %s22 = ssub.s32 %s16, 2
      %s23 = sadd.s32 %s16, 1
      %s24 = ssub.s32 %s16, %s23
      %p25 = scmp.eq.s32.totalorder %s24, 0
      %s27 = sadd.s32 %s26, 1
      %s28 = scalar_select %p25, %s26, %s27
      %p31 = pneg %p25
      %p32 = scmp.eq.s32.totalorder %s16, 1
      %p33 = por %p31, %p32
      %p34 = scmp.ne.s32.totalorder %s26, %s29
      %p35 = scmp.eq.s32.totalorder %s16, 0
      %p36 = por %p34, %p35
      %p37 = scmp.ne.s32.totalorder %s26, %s29
      %p38 = scmp.eq.s32.totalorder %s21, 1
      %p39 = por %p37, %p38
      %p40 = scmp.ne.s32.totalorder %s29, %s30
      %p41 = scmp.eq.s32.totalorder %s21, 0
      %p42 = por %p40, %p41
      %p43 = scmp.ne.s32.totalorder %s29, %s30
      %p44 = scmp.eq.s32.totalorder %s22, 1
      %p45 = por %p43, %p44
      %p47 = scmp.ne.s32.totalorder %s30, %s46
      %p48 = scmp.eq.s32.totalorder %s22, 0
      %p49 = por %p47, %p48
      %s51 = sadd.s32 %s50, 1
      %p54 = scmp.eq.s32.totalorder %s16, 1
      %p55 = scmp.ne.s32.totalorder %s50, %s52
      %p56 = scmp.eq.s32.totalorder %s16, 0
      %p57 = por %p55, %p56
      %p58 = scmp.ne.s32.totalorder %s50, %s52
      %p59 = scmp.eq.s32.totalorder %s21, 1
      %p60 = por %p58, %p59
      %p61 = scmp.ne.s32.totalorder %s52, %s53
      %p62 = scmp.eq.s32.totalorder %s21, 0
      %p63 = por %p61, %p62
      %p64 = scmp.ne.s32.totalorder %s52, %s53
      %p65 = scmp.eq.s32.totalorder %s22, 1
      %p66 = por %p64, %p65
      %p68 = scmp.ne.s32.totalorder %s53, %s67
      %p69 = scmp.eq.s32.totalorder %s22, 0
      %p70 = por %p68, %p69
      %s72 = sadd.s32 %s71, 1
      %p75 = scmp.eq.s32.totalorder %s16, 1
      %p76 = scmp.ne.s32.totalorder %s71, %s73
      %p77 = scmp.eq.s32.totalorder %s16, 0
      %p78 = por %p76, %p77
      %p79 = scmp.ne.s32.totalorder %s71, %s73
      %p80 = scmp.eq.s32.totalorder %s21, 1
      %p81 = por %p79, %p80
      %p82 = scmp.ne.s32.totalorder %s73, %s74
      %p83 = scmp.eq.s32.totalorder %s21, 0
      %p84 = por %p82, %p83
      %p85 = scmp.ne.s32.totalorder %s73, %s74
      %p86 = scmp.eq.s32.totalorder %s22, 1
      %p87 = por %p85, %p86
      %p89 = scmp.ne.s32.totalorder %s74, %s88
      %p90 = scmp.eq.s32.totalorder %s22, 0
      %p91 = por %p89, %p90
      %s92 = ssub.s32 %s16, %s23
      %p93 = scmp.eq.s32.totalorder %s92, 0
      %s95 = sadd.s32 %s94, 1
      %s96 = scalar_select %p93, %s94, %s95
      %p99 = pneg %p93
      %p100 = scmp.eq.s32.totalorder %s16, 1
      %p101 = por %p99, %p100
      %p102 = scmp.ne.s32.totalorder %s94, %s97
      %p103 = scmp.eq.s32.totalorder %s16, 0
      %p104 = por %p102, %p103
      %p105 = scmp.ne.s32.totalorder %s94, %s97
      %p106 = scmp.eq.s32.totalorder %s21, 1
      %p107 = por %p105, %p106
      %p108 = scmp.ne.s32.totalorder %s97, %s98
      %p109 = scmp.eq.s32.totalorder %s21, 0
      %p110 = por %p108, %p109
      %p111 = scmp.ne.s32.totalorder %s97, %s98
      %p112 = scmp.eq.s32.totalorder %s22, 1
      %p113 = por %p111, %p112
      %p115 = scmp.ne.s32.totalorder %s98, %s114
      %p116 = scmp.eq.s32.totalorder %s22, 0
      %p117 = por %p115, %p116
      %p118 = scmp.le.s32.totalorder 1, %s16
      %p119 = scmp.lt.s32.totalorder %s16, 3
      %p120 = pnand %p118, %p119
      %p121 = pneg %p120
      // Predicated region
      $region9: #{tpu_custom_call.1} parent=5 // pred_check
        _
      $region10: #{tpu_custom_call.1} parent=5 // pred_check_branch
        %123 = sbr.rel (%p120) target = $region12
      $region11: #{tpu_custom_call.1} parent=5 // pred_region
        %s124 = ssub.s32 %s16, 1
        // Predicated region
        $region13: #{tpu_custom_call.1} parent=11 // pred_check
          %p125 = pneg %p63
        $region14: #{tpu_custom_call.1} parent=11 // pred_check_branch
          %127 = sbr.rel (%p125) target = $region16
        $region15: #{tpu_custom_call.1} parent=11 // pred_region
          %129 = vsyncadd [#allocation6], 0
          %s130 = sshll.u32 %s1, 4
          %s131 = int_to_ptr.hbm [resolvable:$true] %s130
          %s132 = sshll.u32 [#allocation5], 4
          %s133 = int_to_ptr.vmem [resolvable:$true] %s132
          %138 = dma.hbm_to_vmem [thread:$0]  %s131, 4096, %s133, [#allocation6], 256, 256, 16
        $region16: #{tpu_custom_call.1} parent=11 // pred_fallthru
          _
        // Predicated region
        $region17: #{tpu_custom_call.1} parent=11 // pred_check
          %p139 = pneg %p84
        $region18: #{tpu_custom_call.1} parent=11 // pred_check_branch
          %141 = sbr.rel (%p139) target = $region20
        $region19: #{tpu_custom_call.1} parent=11 // pred_region
          %143 = vsyncadd [#allocation6], 0
          %s145 = sshll.u32 %s2, 4
          %s146 = int_to_ptr.hbm [resolvable:$true] %s145
          %s147 = sshll.u32 [#allocation7], 4
          %s148 = int_to_ptr.vmem [resolvable:$true] %s147
          %150 = dma.hbm_to_vmem [thread:$0]  %s146, 32, %s148, [#allocation6]
        $region20: #{tpu_custom_call.1} parent=11 // pred_fallthru
          _
      $region12: #{tpu_custom_call.1} parent=5 // pred_fallthru
        _
      %p151 = scmp.lt.s32.totalorder %s16, 2
      // Predicated region
      $region21: #{tpu_custom_call.1} parent=5 // pred_check
        %p152 = pneg %p151
      $region22: #{tpu_custom_call.1} parent=5 // pred_check_branch
        %154 = sbr.rel (%p152) target = $region24
      $region23: #{tpu_custom_call.1} parent=5 // pred_region
        // Predicated region
        $region25: #{tpu_custom_call.1} parent=23 // pred_check
          %p155 = pneg %p36
        $region26: #{tpu_custom_call.1} parent=23 // pred_check_branch
          %157 = sbr.rel (%p155) target = $region28
        $region27: #{tpu_custom_call.1} parent=23 // pred_region
          %s158 = sand.u32 %s26, 1
          %s159 = scalar_lea.sflag [#allocation3], %s158
          %s160 = sand.u32 %s26, 1
          %s161 = smul.addr %s160, 8
          %s162 = scalar_lea.vmem [#allocation2], %s161
          %164 = vsyncadd %s159, 0
          %s165 = smul.addr %s16, 8
          %s166 = scalar_lea.hbm %s0, %s165
          %s168 = sshll.u32 %s166, 4
          %s169 = int_to_ptr.hbm [resolvable:$true] %s168
          %s170 = sshll.u32 %s162, 4
          %s171 = int_to_ptr.vmem [resolvable:$true] %s170
          %173 = dma.hbm_to_vmem [thread:$0]  %s169, 128, %s171, %s159
        $region28: #{tpu_custom_call.1} parent=23 // pred_fallthru
          _
      $region24: #{tpu_custom_call.1} parent=5 // pred_fallthru
        _
      %p174 = scmp.le.s32.totalorder 1, %s16
      %p175 = scmp.lt.s32.totalorder %s16, 3
      %p176 = pnand %p174, %p175
      %p177 = pneg %p176
      // Predicated region
      $region29: #{tpu_custom_call.1} parent=5 // pred_check
        _
      $region30: #{tpu_custom_call.1} parent=5 // pred_check_branch
        %179 = sbr.rel (%p176) target = $region32
      $region31: #{tpu_custom_call.1} parent=5 // pred_region
        %s180 = ssub.s32 %s16, 1
        %s181 = sand.u32 %s29, 1
        %s182 = scalar_lea.sflag [#allocation3], %s181
        %s183 = sand.u32 %s29, 1
        %s184 = smul.addr %s183, 8
        %s185 = scalar_lea.vmem [#allocation2], %s184
        // Predicated region
        $region33: #{tpu_custom_call.1} parent=31 // pred_check
          %p186 = pneg %p42
        $region34: #{tpu_custom_call.1} parent=31 // pred_check_branch
          %188 = sbr.rel (%p186) target = $region36
        $region35: #{tpu_custom_call.1} parent=31 // pred_region
          %190 = dma.done %s182, 128
        $region36: #{tpu_custom_call.1} parent=31 // pred_fallthru
          _
        // Predicated region
        $region37: #{tpu_custom_call.1} parent=31 // pred_check
          %p191 = pneg %p63
        $region38: #{tpu_custom_call.1} parent=31 // pred_check_branch
          %193 = sbr.rel (%p191) target = $region40
        $region39: #{tpu_custom_call.1} parent=31 // pred_region
          %195 = dma.done [#allocation6], 4096
        $region40: #{tpu_custom_call.1} parent=31 // pred_fallthru
          _
        // Predicated region
        $region41: #{tpu_custom_call.1} parent=31 // pred_check
          %p196 = pneg %p84
        $region42: #{tpu_custom_call.1} parent=31 // pred_check_branch
          %198 = sbr.rel (%p196) target = $region44
        $region43: #{tpu_custom_call.1} parent=31 // pred_region
          %200 = dma.done [#allocation6], 32
        $region44: #{tpu_custom_call.1} parent=31 // pred_fallthru
          _
        %s201 = sand.u32 %s29, 1
        %s202 = scalar_lea.sflag [#allocation3], %s201
        %s203 = sand.u32 %s29, 1
        %s204 = smul.addr %s203, 8
        %s205 = scalar_lea.vmem [#allocation2], %s204
        %p206 = pneg %p42
        %p207 = pneg %p39
        %p208 = pneg %p63
        %p209 = pneg %p60
        %p210 = pneg %p84
        %p211 = pneg %p81
        %p212 = pneg %p110
        %p213 = pneg %p107
        %s214 = sand.u32 %s97, 1
        %s215 = scalar_lea.sflag [#allocation4], %s214
        %s216 = sand.u32 %s97, 1
        %s217 = smul.addr %s216, 8
        %s218 = scalar_lea.vmem [#allocation8], %s217
        %v219 = vld [vmem:[%s185] sm:$0xff]
        %v220 = vld [vmem:[#allocation5] sm:$0xff]
        %v221 = vld [vmem:[#allocation5 + $0x8] sm:$0xff]
        %v222 = vld [vmem:[#allocation5 + $0x10] sm:$0xff]
        %v223 = vld [vmem:[#allocation5 + $0x18] sm:$0xff]
        %v224 = vld [vmem:[#allocation5 + $0x20] sm:$0xff]
        %v225 = vld [vmem:[#allocation5 + $0x28] sm:$0xff]
        %v226 = vld [vmem:[#allocation5 + $0x30] sm:$0xff]
        %v227 = vld [vmem:[#allocation5 + $0x38] sm:$0xff]
        %v228 = vld [vmem:[#allocation5 + $0x40] sm:$0xff]
        %v229 = vld [vmem:[#allocation5 + $0x48] sm:$0xff]
        %v230 = vld [vmem:[#allocation5 + $0x50] sm:$0xff]
        %v231 = vld [vmem:[#allocation5 + $0x58] sm:$0xff]
        %v232 = vld [vmem:[#allocation5 + $0x60] sm:$0xff]
        %v233 = vld [vmem:[#allocation5 + $0x68] sm:$0xff]
        %v234 = vld [vmem:[#allocation5 + $0x70] sm:$0xff]
        %v235 = vld [vmem:[#allocation5 + $0x78] sm:$0xff]
        %v236 = vld [vmem:[#allocation5 + $0x80] sm:$0xff]
        %v237 = vld [vmem:[#allocation5 + $0x88] sm:$0xff]
        %v238 = vld [vmem:[#allocation5 + $0x90] sm:$0xff]
        %v239 = vld [vmem:[#allocation5 + $0x98] sm:$0xff]
        %v240 = vld [vmem:[#allocation5 + $0xa0] sm:$0xff]
        %v241 = vld [vmem:[#allocation5 + $0xa8] sm:$0xff]
        %v242 = vld [vmem:[#allocation5 + $0xb0] sm:$0xff]
        %v243 = vld [vmem:[#allocation5 + $0xb8] sm:$0xff]
        %v244 = vld [vmem:[#allocation5 + $0xc0] sm:$0xff]
        %v245 = vld [vmem:[#allocation5 + $0xc8] sm:$0xff]
        %v246 = vld [vmem:[#allocation5 + $0xd0] sm:$0xff]
        %v247 = vld [vmem:[#allocation5 + $0xd8] sm:$0xff]
        %v248 = vld [vmem:[#allocation5 + $0xe0] sm:$0xff]
        %v249 = vld [vmem:[#allocation5 + $0xe8] sm:$0xff]
        %v250 = vld [vmem:[#allocation5 + $0xf0] sm:$0xff]
        %v251 = vld [vmem:[#allocation5 + $0xf8] sm:$0xff]
        %v252 = vld [vmem:[#allocation7] sm:$0x3]
        %v254 = vperm.slane %v252, 0
        %v255 = vperm.slane %v252, 1
        %258 = vmatpush.msra.mxu0 %v250
        %259 = vmatpush.msra.mxu0 %v248
        %260 = vmatpush.msra.mxu0 %v246
        %261 = vmatpush.msra.mxu0 %v244
        %262 = vmatpush.msra.mxu0 %v242
        %263 = vmatpush.msra.mxu0 %v240
        %264 = vmatpush.msra.mxu0 %v238
        %265 = vmatpush.msra.mxu0 %v236
        %266 = vmatpush.msra.mxu0 %v234
        %267 = vmatpush.msra.mxu0 %v232
        %268 = vmatpush.msra.mxu0 %v230
        %269 = vmatpush.msra.mxu0 %v228
        %270 = vmatpush.msra.mxu0 %v226
        %271 = vmatpush.msra.mxu0 %v224
        %272 = vmatpush.msra.mxu0 %v222
        %273 = vmatpush.msra.mxu0 %v220
        %274 = vmatmul.f32.gmra.mxu0 %v219
        %v275 = vpop.f32.mrf.mxu0
        %v276 = vadd.f32 %v254, %v275
        %277 = vdwg.mxu0
        %278 = vmatpush.msra.mxu0 %v251
        %279 = vmatpush.msra.mxu0 %v249
        %280 = vmatpush.msra.mxu0 %v247
        %281 = vmatpush.msra.mxu0 %v245
        %282 = vmatpush.msra.mxu0 %v243
        %283 = vmatpush.msra.mxu0 %v241
        %284 = vmatpush.msra.mxu0 %v239
        %285 = vmatpush.msra.mxu0 %v237
        %286 = vmatpush.msra.mxu0 %v235
        %287 = vmatpush.msra.mxu0 %v233
        %288 = vmatpush.msra.mxu0 %v231
        %289 = vmatpush.msra.mxu0 %v229
        %290 = vmatpush.msra.mxu0 %v227
        %291 = vmatpush.msra.mxu0 %v225
        %292 = vmatpush.msra.mxu0 %v223
        %293 = vmatpush.msra.mxu0 %v221
        %294 = vmatmul.f32.gmra.mxu0 %v219
        %v295 = vpop.f32.mrf.mxu0
        %v296 = vadd.f32 %v255, %v295
        %297 = vdwg.mxu0
        %v298 = vxor.u32 %v276, 2147483648
        %v299 = vmul.f32 %v298, 1.442695
        %v300 = vpow.pop %v299
        %v301 = vadd.f32 %v300, 1.0
        %v302 = vrcp.pop %v301
        %v303 = vmul.f32 %v301, %v302
        %v304 = vsub.f32 1.0, %v303
        %v305 = vmul.f32 %v302, %v304
        %v306 = vadd.f32 %v302, %v305
        %vm307 = vweird.f32 %v301
        %vm308 = vweird.f32 %v302
        %vm309 = vmor %vm307, %vm308
        %v310 = vsel %vm309, %v302, %v306
        %v311 = vand.u32 2147483647, %v301
        %vm312 = vcmp.eq.f32.partialorder %v311, 8.507059e+37
        %v313 = vand.u32 %v301, 2147483648
        %v314 = vor.u32 1.1754944e-38, %v313
        %v315 = vsel %vm312, %v314, %v310
        %v316 = vmul.f32 1.0, %v315
        %v317 = vmul.f32 %v316, %v219
        %v318 = vadd.f32 %v317, %v296
        %319 = vst [vmem:[%s218] sm:$0xff] %v318
        %s320 = sand.u32 %s97, 1
        %s321 = scalar_lea.sflag [#allocation4], %s320
        %s322 = sand.u32 %s97, 1
        %s323 = smul.addr %s322, 8
        %s324 = scalar_lea.vmem [#allocation8], %s323
        // Predicated region
        $region45: #{tpu_custom_call.1} parent=31 // pred_check
          %p325 = pneg %p107
        $region46: #{tpu_custom_call.1} parent=31 // pred_check_branch
          %327 = sbr.rel (%p325) target = $region48
        $region47: #{tpu_custom_call.1} parent=31 // pred_region
          %329 = vsyncadd %s321, 0
          %s330 = smul.addr %s21, 8
          %s331 = scalar_lea.hbm %s3, %s330
          %s333 = sshll.u32 %s324, 4
          %s334 = int_to_ptr.vmem [resolvable:$true] %s333
          %s335 = sshll.u32 %s331, 4
          %s336 = int_to_ptr.hbm [resolvable:$true] %s335
          %338 = dma.vmem_to_hbm [thread:$0]  %s334, 128, %s336, %s321
        $region48: #{tpu_custom_call.1} parent=31 // pred_fallthru
          _
      $region32: #{tpu_custom_call.1} parent=5 // pred_fallthru
        _
      %p339 = scmp.le.s32.totalorder 2, %s16
      // Predicated region
      $region49: #{tpu_custom_call.1} parent=5 // pred_check
        %p340 = pneg %p339
      $region50: #{tpu_custom_call.1} parent=5 // pred_check_branch
        %342 = sbr.rel (%p340) target = $region52
      $region51: #{tpu_custom_call.1} parent=5 // pred_region
        %s343 = ssub.s32 %s16, 2
        // Predicated region
        $region53: #{tpu_custom_call.1} parent=51 // pred_check
          %p344 = pneg %p113
        $region54: #{tpu_custom_call.1} parent=51 // pred_check_branch
          %346 = sbr.rel (%p344) target = $region56
        $region55: #{tpu_custom_call.1} parent=51 // pred_region
          %s347 = sand.u32 %s98, 1
          %s348 = scalar_lea.sflag [#allocation4], %s347
          %s349 = sand.u32 %s98, 1
          %s350 = smul.addr %s349, 8
          %s351 = scalar_lea.vmem [#allocation8], %s350
          %353 = dma.done %s348, 128
        $region56: #{tpu_custom_call.1} parent=51 // pred_fallthru
          _
      $region52: #{tpu_custom_call.1} parent=5 // pred_fallthru
        _
    $region6: #{tpu_custom_call.1} parent=1 // loop_footer
      %s20 = sadd.s32 1, %s16
    $region7: #{tpu_custom_call.1} parent=1 // loop_footer_branch
      %15 = sbr.rel target = $region3
    $region8: #{tpu_custom_call.1} parent=1 // loop_exit
      _
    %354 = vsyncpa [#allocation3], 1
    %s355 = scalar_lea.sflag [#allocation3], 1
    %356 = vsyncpa %s355, 1
    %357 = vsyncpa [#allocation6], 1
    %358 = vsyncpa [#allocation4], 1
    %s359 = scalar_lea.sflag [#allocation4], 1
    %360 = vsyncpa %s359, 1

// kernel: tpu_custom_call.1
$region0: #{tpu_custom_call.1}
  #allocation0 [shape = 'u32[]', space=smem, size = 0x4, offset = 0x4, fixed_abs, tag = 'smem constant byte address 0x4 - core index']
  #allocation1 [shape = 'u32[72,128]{1,0:T(1,128)}', space=vmem, size = 0x9000, scoped, tag = 'internal scratch']
  %s0 = inlined_call_operand.hbm [shape: f32[16,128], index: 0, kind: input, shape index: {}]
  %s1 = inlined_call_operand.hbm [shape: f32[128,256], index: 1, kind: input, shape index: {}]
  %s2 = inlined_call_operand.hbm [shape: f32[1,256], index: 2, kind: input, shape index: {}]
  %s3 = inlined_call_operand.hbm [shape: f32[16,128], index: 3, kind: output, shape index: {}]
  %s4 = sld [smem:[#allocation0]]
  $region57: #{tpu_custom_call.1} parent=0
    _
  %s6 = ssub.s32 1, %s4
  %s7 = scalar_select 0, %s6, %s4
  $region1: #{tpu_custom_call.1} parent=0
    #allocation2 [shape = 'u8[8192]{0}', space=vmem, size = 0x2000, scoped, tag = 'input window, operand 0']
    #allocation3 [shape = 's32[2]{0}', space=sflag, size = 0x8, scoped, tag = 'scoped memory for tpu_custom_call.1']
    #allocation4 [shape = 's32[2]{0}', space=sflag, size = 0x8, scoped, tag = 'scoped memory for tpu_custom_call.1']
    #allocation5 [shape = 'u8[131072]{0}', space=vmem, size = 0x20000, scoped, tag = 'input window, operand 1, single buffered']
    #allocation6 [shape = 's32[1]{0}', space=sflag, size = 0x4, scoped, tag = 'scoped memory for tpu_custom_call.1']
    #allocation7 [shape = 'u8[1024]{0}', space=vmem, size = 0x400, scoped, tag = 'input window, operand 2, single buffered']
    #allocation8 [shape = 'u8[8192]{0}', space=vmem, size = 0x2000, scoped, tag = 'output window, operand 0']
    %8 = vsyncpa [#allocation3], 0
    %s9 = scalar_lea.sflag [#allocation3], 1
    %10 = vsyncpa %s9, 0
    %11 = vsyncpa [#allocation6], 0
    %12 = vsyncpa [#allocation4], 0
    %s13 = scalar_lea.sflag [#allocation4], 1
    %14 = vsyncpa %s13, 0
    loop: start=0, step=1, limit=4
    $region2: #{tpu_custom_call.1} parent=1 // loop_pre_header
      _
    $region3: #{tpu_custom_call.1} parent=1 // loop_header
      %s16 = sphi 0, %s20
      %p17 = scmp.ge.s32.totalorder %s16, 4
      %s26 = sphi 0, %s28
      %s29 = sphi 0, %s26
      %s30 = sphi 0, %s29
      %s46 = sphi 0, %s30
      %s50 = sphi 0, %s50
      %s52 = sphi 0, %s50
      %s53 = sphi 0, %s52
      %s67 = sphi 0, %s53
      %s71 = sphi 0, %s71
      %s73 = sphi 0, %s71
      %s74 = sphi 0, %s73
      %s88 = sphi 0, %s74
      %s94 = sphi 0, %s96
      %s97 = sphi 0, %s94
      %s98 = sphi 0, %s97
      %s114 = sphi 0, %s98
    $region4: #{tpu_custom_call.1} parent=1 // loop_header_branch
      %19 = sbr.rel (%p17) target = $region8
    $region5: #{tpu_custom_call.1} parent=1 // loop_body
      %s21 = ssub.s32 %s16, 1
      %s22 = ssub.s32 %s16, 2
      %s23 = sadd.s32 %s16, 1
      %s24 = ssub.s32 %s16, %s23
      %p25 = scmp.eq.s32.totalorder %s24, 0
      %s27 = sadd.s32 %s26, 1
      %s28 = scalar_select %p25, %s26, %s27
      %p31 = pneg %p25
      %p32 = scmp.eq.s32.totalorder %s16, 1
      %p33 = por %p31, %p32
      %p34 = scmp.ne.s32.totalorder %s26, %s29
      %p35 = scmp.eq.s32.totalorder %s16, 0
      %p36 = por %p34, %p35
      %p37 = scmp.ne.s32.totalorder %s26, %s29
      %p38 = scmp.eq.s32.totalorder %s21, 1
      %p39 = por %p37, %p38
      %p40 = scmp.ne.s32.totalorder %s29, %s30
      %p41 = scmp.eq.s32.totalorder %s21, 0
      %p42 = por %p40, %p41
      %p43 = scmp.ne.s32.totalorder %s29, %s30
      %p44 = scmp.eq.s32.totalorder %s22, 1
      %p45 = por %p43, %p44
      %p47 = scmp.ne.s32.totalorder %s30, %s46
      %p48 = scmp.eq.s32.totalorder %s22, 0
      %p49 = por %p47, %p48
      %s51 = sadd.s32 %s50, 1
      %p54 = scmp.eq.s32.totalorder %s16, 1
      %p55 = scmp.ne.s32.totalorder %s50, %s52
      %p56 = scmp.eq.s32.totalorder %s16, 0
      %p57 = por %p55, %p56
      %p58 = scmp.ne.s32.totalorder %s50, %s52
      %p59 = scmp.eq.s32.totalorder %s21, 1
      %p60 = por %p58, %p59
      %p61 = scmp.ne.s32.totalorder %s52, %s53
      %p62 = scmp.eq.s32.totalorder %s21, 0
      %p63 = por %p61, %p62
      %p64 = scmp.ne.s32.totalorder %s52, %s53
      %p65 = scmp.eq.s32.totalorder %s22, 1
      %p66 = por %p64, %p65
      %p68 = scmp.ne.s32.totalorder %s53, %s67
      %p69 = scmp.eq.s32.totalorder %s22, 0
      %p70 = por %p68, %p69
      %s72 = sadd.s32 %s71, 1
      %p75 = scmp.eq.s32.totalorder %s16, 1
      %p76 = scmp.ne.s32.totalorder %s71, %s73
      %p77 = scmp.eq.s32.totalorder %s16, 0
      %p78 = por %p76, %p77
      %p79 = scmp.ne.s32.totalorder %s71, %s73
      %p80 = scmp.eq.s32.totalorder %s21, 1
      %p81 = por %p79, %p80
      %p82 = scmp.ne.s32.totalorder %s73, %s74
      %p83 = scmp.eq.s32.totalorder %s21, 0
      %p84 = por %p82, %p83
      %p85 = scmp.ne.s32.totalorder %s73, %s74
      %p86 = scmp.eq.s32.totalorder %s22, 1
      %p87 = por %p85, %p86
      %p89 = scmp.ne.s32.totalorder %s74, %s88
      %p90 = scmp.eq.s32.totalorder %s22, 0
      %p91 = por %p89, %p90
      %s92 = ssub.s32 %s16, %s23
      %p93 = scmp.eq.s32.totalorder %s92, 0
      %s95 = sadd.s32 %s94, 1
      %s96 = scalar_select %p93, %s94, %s95
      %p99 = pneg %p93
      %p100 = scmp.eq.s32.totalorder %s16, 1
      %p101 = por %p99, %p100
      %p102 = scmp.ne.s32.totalorder %s94, %s97
      %p103 = scmp.eq.s32.totalorder %s16, 0
      %p104 = por %p102, %p103
      %p105 = scmp.ne.s32.totalorder %s94, %s97
      %p106 = scmp.eq.s32.totalorder %s21, 1
      %p107 = por %p105, %p106
      %p108 = scmp.ne.s32.totalorder %s97, %s98
      %p109 = scmp.eq.s32.totalorder %s21, 0
      %p110 = por %p108, %p109
      %p111 = scmp.ne.s32.totalorder %s97, %s98
      %p112 = scmp.eq.s32.totalorder %s22, 1
      %p113 = por %p111, %p112
      %p115 = scmp.ne.s32.totalorder %s98, %s114
      %p116 = scmp.eq.s32.totalorder %s22, 0
      %p117 = por %p115, %p116
      %p118 = scmp.le.s32.totalorder 1, %s16
      %p119 = scmp.lt.s32.totalorder %s16, 3
      %p120 = pnand %p118, %p119
      %p121 = pneg %p120
      // Predicated region
      $region9: #{tpu_custom_call.1} parent=5 // pred_check
        _
      $region10: #{tpu_custom_call.1} parent=5 // pred_check_branch
        %123 = sbr.rel (%p120) target = $region12
      $region11: #{tpu_custom_call.1} parent=5 // pred_region
        %s124 = ssub.s32 %s16, 1
        // Predicated region
        $region13: #{tpu_custom_call.1} parent=11 // pred_check
          %p125 = pneg %p63
        $region14: #{tpu_custom_call.1} parent=11 // pred_check_branch
          %127 = sbr.rel (%p125) target = $region16
        $region15: #{tpu_custom_call.1} parent=11 // pred_region
          %129 = vsyncadd [#allocation6], 0
          %s130 = sshll.u32 %s1, 4
          %s131 = int_to_ptr.hbm [resolvable:$true] %s130
          %s132 = sshll.u32 [#allocation5], 4
          %s133 = int_to_ptr.vmem [resolvable:$true] %s132
          %138 = dma.hbm_to_vmem [thread:$0]  %s131, 4096, %s133, [#allocation6], 256, 256, 16
        $region16: #{tpu_custom_call.1} parent=11 // pred_fallthru
          _
        // Predicated region
        $region17: #{tpu_custom_call.1} parent=11 // pred_check
          %p139 = pneg %p84
        $region18: #{tpu_custom_call.1} parent=11 // pred_check_branch
          %141 = sbr.rel (%p139) target = $region20
        $region19: #{tpu_custom_call.1} parent=11 // pred_region
          %143 = vsyncadd [#allocation6], 0
          %s145 = sshll.u32 %s2, 4
          %s146 = int_to_ptr.hbm [resolvable:$true] %s145
          %s147 = sshll.u32 [#allocation7], 4
          %s148 = int_to_ptr.vmem [resolvable:$true] %s147
          %150 = dma.hbm_to_vmem [thread:$0]  %s146, 32, %s148, [#allocation6]
        $region20: #{tpu_custom_call.1} parent=11 // pred_fallthru
          _
      $region12: #{tpu_custom_call.1} parent=5 // pred_fallthru
        _
      %p151 = scmp.lt.s32.totalorder %s16, 2
      // Predicated region
      $region21: #{tpu_custom_call.1} parent=5 // pred_check
        %p152 = pneg %p151
      $region22: #{tpu_custom_call.1} parent=5 // pred_check_branch
        %154 = sbr.rel (%p152) target = $region24
      $region23: #{tpu_custom_call.1} parent=5 // pred_region
        // Predicated region
        $region25: #{tpu_custom_call.1} parent=23 // pred_check
          %p155 = pneg %p36
        $region26: #{tpu_custom_call.1} parent=23 // pred_check_branch
          %157 = sbr.rel (%p155) target = $region28
        $region27: #{tpu_custom_call.1} parent=23 // pred_region
          %s158 = sand.u32 %s26, 1
          %s159 = scalar_lea.sflag [#allocation3], %s158
          %s160 = sand.u32 %s26, 1
          %s161 = smul.addr %s160, 8
          %s162 = scalar_lea.vmem [#allocation2], %s161
          %164 = vsyncadd %s159, 0
          %s165 = smul.addr %s16, 8
          %s166 = scalar_lea.hbm %s0, %s165
          %s168 = sshll.u32 %s166, 4
          %s169 = int_to_ptr.hbm [resolvable:$true] %s168
          %s170 = sshll.u32 %s162, 4
          %s171 = int_to_ptr.vmem [resolvable:$true] %s170
          %173 = dma.hbm_to_vmem [thread:$0]  %s169, 128, %s171, %s159
        $region28: #{tpu_custom_call.1} parent=23 // pred_fallthru
          _
      $region24: #{tpu_custom_call.1} parent=5 // pred_fallthru
        _
      %p174 = scmp.le.s32.totalorder 1, %s16
      %p175 = scmp.lt.s32.totalorder %s16, 3
      %p176 = pnand %p174, %p175
      %p177 = pneg %p176
      // Predicated region
      $region29: #{tpu_custom_call.1} parent=5 // pred_check
        _
      $region30: #{tpu_custom_call.1} parent=5 // pred_check_branch
        %179 = sbr.rel (%p176) target = $region32
      $region31: #{tpu_custom_call.1} parent=5 // pred_region
        %s180 = ssub.s32 %s16, 1
        %s181 = sand.u32 %s29, 1
        %s182 = scalar_lea.sflag [#allocation3], %s181
        %s183 = sand.u32 %s29, 1
        %s184 = smul.addr %s183, 8
        %s185 = scalar_lea.vmem [#allocation2], %s184
        // Predicated region
        $region33: #{tpu_custom_call.1} parent=31 // pred_check
          %p186 = pneg %p42
        $region34: #{tpu_custom_call.1} parent=31 // pred_check_branch
          %188 = sbr.rel (%p186) target = $region36
        $region35: #{tpu_custom_call.1} parent=31 // pred_region
          %190 = dma.done %s182, 128
        $region36: #{tpu_custom_call.1} parent=31 // pred_fallthru
          _
        // Predicated region
        $region37: #{tpu_custom_call.1} parent=31 // pred_check
          %p191 = pneg %p63
        $region38: #{tpu_custom_call.1} parent=31 // pred_check_branch
          %193 = sbr.rel (%p191) target = $region40
        $region39: #{tpu_custom_call.1} parent=31 // pred_region
          %195 = dma.done [#allocation6], 4096
        $region40: #{tpu_custom_call.1} parent=31 // pred_fallthru
          _
        // Predicated region
        $region41: #{tpu_custom_call.1} parent=31 // pred_check
          %p196 = pneg %p84
        $region42: #{tpu_custom_call.1} parent=31 // pred_check_branch
          %198 = sbr.rel (%p196) target = $region44
        $region43: #{tpu_custom_call.1} parent=31 // pred_region
          %200 = dma.done [#allocation6], 32
        $region44: #{tpu_custom_call.1} parent=31 // pred_fallthru
          _
        %s201 = sand.u32 %s29, 1
        %s202 = scalar_lea.sflag [#allocation3], %s201
        %s203 = sand.u32 %s29, 1
        %s204 = smul.addr %s203, 8
        %s205 = scalar_lea.vmem [#allocation2], %s204
        %p206 = pneg %p42
        %p207 = pneg %p39
        %p208 = pneg %p63
        %p209 = pneg %p60
        %p210 = pneg %p84
        %p211 = pneg %p81
        %p212 = pneg %p110
        %p213 = pneg %p107
        %s214 = sand.u32 %s97, 1
        %s215 = scalar_lea.sflag [#allocation4], %s214
        %s216 = sand.u32 %s97, 1
        %s217 = smul.addr %s216, 8
        %s218 = scalar_lea.vmem [#allocation8], %s217
        %v219 = vld [vmem:[%s185] sm:$0xff]
        %v220 = vld [vmem:[#allocation5] sm:$0xff]
        %v221 = vld [vmem:[#allocation5 + $0x8] sm:$0xff]
        %v222 = vld [vmem:[#allocation5 + $0x10] sm:$0xff]
        %v223 = vld [vmem:[#allocation5 + $0x18] sm:$0xff]
        %v224 = vld [vmem:[#allocation5 + $0x20] sm:$0xff]
        %v225 = vld [vmem:[#allocation5 + $0x28] sm:$0xff]
        %v226 = vld [vmem:[#allocation5 + $0x30] sm:$0xff]
        %v227 = vld [vmem:[#allocation5 + $0x38] sm:$0xff]
        %v228 = vld [vmem:[#allocation5 + $0x40] sm:$0xff]
        %v229 = vld [vmem:[#allocation5 + $0x48] sm:$0xff]
        %v230 = vld [vmem:[#allocation5 + $0x50] sm:$0xff]
        %v231 = vld [vmem:[#allocation5 + $0x58] sm:$0xff]
        %v232 = vld [vmem:[#allocation5 + $0x60] sm:$0xff]
        %v233 = vld [vmem:[#allocation5 + $0x68] sm:$0xff]
        %v234 = vld [vmem:[#allocation5 + $0x70] sm:$0xff]
        %v235 = vld [vmem:[#allocation5 + $0x78] sm:$0xff]
        %v236 = vld [vmem:[#allocation5 + $0x80] sm:$0xff]
        %v237 = vld [vmem:[#allocation5 + $0x88] sm:$0xff]
        %v238 = vld [vmem:[#allocation5 + $0x90] sm:$0xff]
        %v239 = vld [vmem:[#allocation5 + $0x98] sm:$0xff]
        %v240 = vld [vmem:[#allocation5 + $0xa0] sm:$0xff]
        %v241 = vld [vmem:[#allocation5 + $0xa8] sm:$0xff]
        %v242 = vld [vmem:[#allocation5 + $0xb0] sm:$0xff]
        %v243 = vld [vmem:[#allocation5 + $0xb8] sm:$0xff]
        %v244 = vld [vmem:[#allocation5 + $0xc0] sm:$0xff]
        %v245 = vld [vmem:[#allocation5 + $0xc8] sm:$0xff]
        %v246 = vld [vmem:[#allocation5 + $0xd0] sm:$0xff]
        %v247 = vld [vmem:[#allocation5 + $0xd8] sm:$0xff]
        %v248 = vld [vmem:[#allocation5 + $0xe0] sm:$0xff]
        %v249 = vld [vmem:[#allocation5 + $0xe8] sm:$0xff]
        %v250 = vld [vmem:[#allocation5 + $0xf0] sm:$0xff]
        %v251 = vld [vmem:[#allocation5 + $0xf8] sm:$0xff]
        %v252 = vld [vmem:[#allocation7] sm:$0x3]
        %v254 = vperm.slane %v252, 0
        %v255 = vperm.slane %v252, 1
        %258 = vmatpush.msra.mxu0 %v250
        %259 = vmatpush.msra.mxu0 %v248
        %260 = vmatpush.msra.mxu0 %v246
        %261 = vmatpush.msra.mxu0 %v244
        %262 = vmatpush.msra.mxu0 %v242
        %263 = vmatpush.msra.mxu0 %v240
        %264 = vmatpush.msra.mxu0 %v238
        %265 = vmatpush.msra.mxu0 %v236
        %266 = vmatpush.msra.mxu0 %v234
        %267 = vmatpush.msra.mxu0 %v232
        %268 = vmatpush.msra.mxu0 %v230
        %269 = vmatpush.msra.mxu0 %v228
        %270 = vmatpush.msra.mxu0 %v226
        %271 = vmatpush.msra.mxu0 %v224
        %272 = vmatpush.msra.mxu0 %v222
        %273 = vmatpush.msra.mxu0 %v220
        %274 = vmatmul.f32.gmra.mxu0 %v219
        %v275 = vpop.f32.mrf.mxu0
        %v276 = vadd.f32 %v254, %v275
        %277 = vdwg.mxu0
        %278 = vmatpush.msra.mxu0 %v251
        %279 = vmatpush.msra.mxu0 %v249
        %280 = vmatpush.msra.mxu0 %v247
        %281 = vmatpush.msra.mxu0 %v245
        %282 = vmatpush.msra.mxu0 %v243
        %283 = vmatpush.msra.mxu0 %v241
        %284 = vmatpush.msra.mxu0 %v239
        %285 = vmatpush.msra.mxu0 %v237
        %286 = vmatpush.msra.mxu0 %v235
        %287 = vmatpush.msra.mxu0 %v233
        %288 = vmatpush.msra.mxu0 %v231
        %289 = vmatpush.msra.mxu0 %v229
        %290 = vmatpush.msra.mxu0 %v227
        %291 = vmatpush.msra.mxu0 %v225
        %292 = vmatpush.msra.mxu0 %v223
        %293 = vmatpush.msra.mxu0 %v221
        %294 = vmatmul.f32.gmra.mxu0 %v219
        %v295 = vpop.f32.mrf.mxu0
        %v296 = vadd.f32 %v255, %v295
        %297 = vdwg.mxu0
        %v298 = vxor.u32 %v276, 2147483648
        %v299 = vmul.f32 %v298, 1.442695
        %v300 = vpow.pop %v299
        %v301 = vadd.f32 %v300, 1.0
        %v302 = vrcp.pop %v301
        %v303 = vmul.f32 %v301, %v302
        %v304 = vsub.f32 1.0, %v303
        %v305 = vmul.f32 %v302, %v304
        %v306 = vadd.f32 %v302, %v305
        %vm307 = vweird.f32 %v301
        %vm308 = vweird.f32 %v302
        %vm309 = vmor %vm307, %vm308
        %v310 = vsel %vm309, %v302, %v306
        %v311 = vand.u32 2147483647, %v301
        %vm312 = vcmp.eq.f32.partialorder %v311, 8.507059e+37
        %v313 = vand.u32 %v301, 2147483648
        %v314 = vor.u32 1.1754944e-38, %v313
        %v315 = vsel %vm312, %v314, %v310
        %v316 = vmul.f32 1.0, %v315
        %v317 = vmul.f32 %v316, %v219
        %v318 = vadd.f32 %v317, %v296
        %319 = vst [vmem:[%s218] sm:$0xff] %v318
        %s320 = sand.u32 %s97, 1
        %s321 = scalar_lea.sflag [#allocation4], %s320
        %s322 = sand.u32 %s97, 1
        %s323 = smul.addr %s322, 8
        %s324 = scalar_lea.vmem [#allocation8], %s323
        // Predicated region
        $region45: #{tpu_custom_call.1} parent=31 // pred_check
          %p325 = pneg %p107
        $region46: #{tpu_custom_call.1} parent=31 // pred_check_branch
          %327 = sbr.rel (%p325) target = $region48
        $region47: #{tpu_custom_call.1} parent=31 // pred_region
          %329 = vsyncadd %s321, 0
          %s330 = smul.addr %s21, 8
          %s331 = scalar_lea.hbm %s3, %s330
          %s333 = sshll.u32 %s324, 4
          %s334 = int_to_ptr.vmem [resolvable:$true] %s333
          %s335 = sshll.u32 %s331, 4
          %s336 = int_to_ptr.hbm [resolvable:$true] %s335
          %338 = dma.vmem_to_hbm [thread:$0]  %s334, 128, %s336, %s321
        $region48: #{tpu_custom_call.1} parent=31 // pred_fallthru
          _
      $region32: #{tpu_custom_call.1} parent=5 // pred_fallthru
        _
      %p339 = scmp.le.s32.totalorder 2, %s16
      // Predicated region
      $region49: #{tpu_custom_call.1} parent=5 // pred_check
        %p340 = pneg %p339
      $region50: #{tpu_custom_call.1} parent=5 // pred_check_branch
        %342 = sbr.rel (%p340) target = $region52
      $region51: #{tpu_custom_call.1} parent=5 // pred_region
        %s343 = ssub.s32 %s16, 2
        // Predicated region
        $region53: #{tpu_custom_call.1} parent=51 // pred_check
          %p344 = pneg %p113
        $region54: #{tpu_custom_call.1} parent=51 // pred_check_branch
          %346 = sbr.rel (%p344) target = $region56
        $region55: #{tpu_custom_call.1} parent=51 // pred_region
          %s347 = sand.u32 %s98, 1
          %s348 = scalar_lea.sflag [#allocation4], %s347
          %s349 = sand.u32 %s98, 1
          %s350 = smul.addr %s349, 8
          %s351 = scalar_lea.vmem [#allocation8], %s350
          %353 = dma.done %s348, 128
        $region56: #{tpu_custom_call.1} parent=51 // pred_fallthru
          _
      $region52: #{tpu_custom_call.1} parent=5 // pred_fallthru
        _
    $region6: #{tpu_custom_call.1} parent=1 // loop_footer
      %s20 = sadd.s32 1, %s16
    $region7: #{tpu_custom_call.1} parent=1 // loop_footer_branch
      %15 = sbr.rel target = $region3
    $region8: #{tpu_custom_call.1} parent=1 // loop_exit
      _
    %354 = vsyncpa [#allocation3], 1
    %s355 = scalar_lea.sflag [#allocation3], 1
    %356 = vsyncpa %s355, 1
    %357 = vsyncpa [#allocation6], 1
    %358 = vsyncpa [#allocation4], 1
    %s359 = scalar_lea.sflag [#allocation4], 1
    %360 = vsyncpa %s359, 1

</llo_original>
